<compile_context>
chip_gen: v7x
topology: tpu7x:2x2x1
jax: 0.10.0
libtpu: 0.0.40
codegen_flags: <defaults>
</compile_context>

<pallas_src>
import numpy as np
import jax
import jax.numpy as jnp
from jax.experimental import pallas as pl
from jax.experimental.pallas import tpu as pltpu


# ---------------------------------------------------------------------------
# Deterministic weight init: replicate scipy.ndimage.gaussian_filter applied to
# a centered impulse (truncate=4.0, 'reflect' boundary), as in _init_kernel().
# gaussian_filter is axis-separable, so the 2-D kernel is exactly outer(r, r).
# ---------------------------------------------------------------------------
def gaussian_kernel_1d(kernel_size: int) -> np.ndarray:
    assert kernel_size % 2 != 0
    sigma = 0.3 * ((kernel_size - 1) * 0.5 - 1) + 0.8
    truncate = 4.0
    lw = int(truncate * sigma + 0.5)
    x = np.arange(-lw, lw + 1, dtype=np.float64)
    phi = np.exp(-0.5 * (x / sigma) ** 2)
    phi /= phi.sum()

    n = np.zeros(kernel_size, dtype=np.float64)
    n[kernel_size // 2] = 1.0
    npad = np.pad(n, (lw, lw), mode="symmetric")  # scipy's 'reflect' boundary mode
    r = np.array(
        [np.dot(npad[k:k + 2 * lw + 1], phi) for k in range(kernel_size)],
        dtype=np.float64,
    )
    return r.astype(np.float32)


def gaussian_kernel_2d(kernel_size: int) -> np.ndarray:
    r = gaussian_kernel_1d(kernel_size).astype(np.float64)
    return np.outer(r, r).astype(np.float32)


# ---------------------------------------------------------------------------
# Static reflect-folded band coefficients.
# band[p+d, i] = weight applied to the value that a circular shift by +d delivers
# at position i; out-of-range diagonals are 0, border positions accumulate the
# reflected taps onto the in-range diagonal.  out[i] = sum_d band[p+d, i] * x[i+d]
# then reproduces ReflectionPad + K-tap conv exactly (single reflection, p < n).
# ---------------------------------------------------------------------------
def _reflect_band_coeffs(n: int, taps: np.ndarray) -> np.ndarray:
    K = int(taps.shape[0])
    p = K // 2
    assert p < n, "reflection padding requires kernel_size // 2 < spatial dim"
    band = np.zeros((K, n), dtype=np.float64)
    for i in range(n):
        for t in range(K):
            j = i + t - p
            if j < 0:
                j = -j
            elif j >= n:
                j = 2 * (n - 1) - j
            band[p + (j - i), i] += float(taps[t])   # |j - i| <= p by construction
    return band.astype(np.float32)


# ---------------------------------------------------------------------------
# pltpu.roll sign calibration (cached tiny probe): find sign s such that
#   pltpu.roll(x, s * d, axis=-1)[i] == x[(i + d) % n]
# ---------------------------------------------------------------------------
_ROLL_SIGN_CACHE = None


def _gather_roll_sign() -> int:
    global _ROLL_SIGN_CACHE
    if _ROLL_SIGN_CACHE is None:
        def probe(x_ref, o_ref):
            o_ref[...] = pltpu.roll(x_ref[...], 1, axis=1)

        xs = jnp.broadcast_to(
            jnp.arange(128, dtype=jnp.float32)[None, :], (8, 128)
        )
        out = pl.pallas_call(
            probe, out_shape=jax.ShapeDtypeStruct((8, 128), jnp.float32)
        )(xs)
        # jnp.roll semantics -> out[0,0] == 127 ; opposite convention -> 1
        _ROLL_SIGN_CACHE = -1 if int(jax.device_get(out[0, 0])) == 127 else 1
    return _ROLL_SIGN_CACHE


# ---------------------------------------------------------------------------
# Kernel: one block = Rb flattened images (rows) x L = H*W pixels (lanes).
# Vertical pass = lane-rolls by multiples of W, horizontal pass = lane-rolls by
# +/-d, both weighted by static per-position coefficient rows (reflect folded in).
# ---------------------------------------------------------------------------
def _make_blur_kernel(W: int, K: int, L: int, roll_sign: int):
    p = K // 2

    def kernel(cv_ref, ch_ref, x_ref, o_ref):
        # cv_ref, ch_ref : VMEM (K, L) f32 coefficient rows (resident across steps)
        # x_ref, o_ref   : VMEM (Rb, L)
        x = x_ref[...].astype(jnp.float32)

        # Vertical pass: t[f] = sum_d cv[p+d, f] * x[(f + d*W) % L]
        t = cv_ref[p:p + 1, :] * x
        for idx, d in enumerate(range(-p, p + 1)):
            if d == 0:
                continue
            shifted = pltpu.roll(x, (roll_sign * d * W) % L, axis=1)
            t = t + cv_ref[idx:idx + 1, :] * shifted

        # Horizontal pass: out[f] = sum_d ch[p+d, f] * t[(f + d) % L]
        out = ch_ref[p:p + 1, :] * t
        for idx, d in enumerate(range(-p, p + 1)):
            if d == 0:
                continue
            shifted = pltpu.roll(t, (roll_sign * d) % L, axis=1)
            out = out + ch_ref[idx:idx + 1, :] * shifted

        o_ref[...] = out.astype(o_ref.dtype)

    return kernel


# ---------------------------------------------------------------------------
# Chip-aware block / VMEM sizing.
# ---------------------------------------------------------------------------
def _tpu_vmem_capacity_bytes() -> int:
    try:
        info = pltpu.get_tpu_info()
        cap = int(getattr(info, "vmem_capacity_bytes", 0))
        if cap > 0:
            return cap
    except Exception:
        pass
    return 64 * 1024 * 1024   # conservative default (v7x per-TensorCore VMEM)


def _choose_rows_per_block(R: int, L: int, budget_elems: int) -> int:
    """Rows (flattened N*C images) per block: multiple of 8 (sublanes), near the
    per-block budget, with an even number of grid steps when possible (v7x has
    2 TensorCores sharing the parallel axis)."""
    if R * L <= budget_elems or R <= 8:
        return R
    rb = (budget_elems // L) // 8 * 8
    rb = max(8, min(rb, (R // 8) * 8))
    for cand in range(rb, 7, -8):
        steps = -(-R // cand)
        if steps >= 2 and steps % 2 == 0:
            return cand
    return rb


# ---------------------------------------------------------------------------
# Wrapper: flatten (N, C, H, W) -> (N*C, H*W), one 1-D "parallel" grid.
# ---------------------------------------------------------------------------
def gaussian_blur(x: jnp.ndarray, kernel_size: int) -> jnp.ndarray:
    """Forward of GaussianBlurLayer with the fixed _init_kernel() Gaussian weights
    (shared across channels), matching ReflectionPad2d + depthwise conv."""
    assert x.ndim == 4, "'GaussianBlurLayer' requires a 4D tensor as input"
    K = int(kernel_size)
    assert K % 2 != 0
    N, C, H, W = x.shape
    p = K // 2
    assert p < H and p < W, "reflection padding requires kernel_size//2 < min(H, W)"

    R, L = N * C, H * W
    taps = gaussian_kernel_1d(K)                                          # (K,)
    cv = jnp.asarray(np.repeat(_reflect_band_coeffs(H, taps), W, axis=1))  # (K, L)
    ch = jnp.asarray(np.tile(_reflect_band_coeffs(W, taps), (1, H)))       # (K, L)

    x_flat = x.reshape(R, L)   # lane-dense: all H*W pixels of an image on lanes

    vmem_cap = _tpu_vmem_capacity_bytes()
    block_bytes = max(vmem_cap // 20, 512 * 1024)   # ~3.2 MiB (v7x) .. 6.4 MiB (v5e/v6e)
    budget_elems = block_bytes // 4
    Rb = _choose_rows_per_block(R, L, budget_elems)
    num_blocks = pl.cdiv(R, Rb)
    vmem_limit = min(int(vmem_cap * 0.6), 100 * 1024 * 1024)

    # TODO(synk): frames so large that even 8 flattened rows exceed the block budget
    # (e.g. 4K single images) still get oversized blocks; they need row-strip tiling
    # with a p-row halo instead of whole-image rows.

    kernel = _make_blur_kernel(W, K, L, _gather_roll_sign())

    out_flat = pl.pallas_call(
        kernel,
        out_shape=jax.ShapeDtypeStruct((R, L), x.dtype),
        grid=(num_blocks,),
        in_specs=[
            pl.BlockSpec((K, L), lambda g: (0, 0)),   # cv: constant block, stays resident
            pl.BlockSpec((K, L), lambda g: (0, 0)),   # ch: constant block, stays resident
            pl.BlockSpec((Rb, L), lambda g: (g, 0)),
        ],
        out_specs=pl.BlockSpec((Rb, L), lambda g: (g, 0)),
        compiler_params=pltpu.CompilerParams(
            dimension_semantics=("parallel",),
            vmem_limit_bytes=vmem_limit,
        ),
    )(cv, ch, x_flat)
    return out_flat.reshape(N, C, H, W)


# ---------------------------------------------------------------------------
# Reference (plain JAX): ReflectionPad2d + depthwise 2-D conv (groups=C).
# ---------------------------------------------------------------------------
def gaussian_blur_ref(x, weight2d_per_channel):
    N, C, H, W = x.shape
    K = weight2d_per_channel.shape[1]
    p = K // 2
    xp = jnp.pad(x, ((0, 0), (0, 0), (p, p), (p, p)), mode="reflect")
    w = weight2d_per_channel[:, None, :, :]   # (C, 1, K, K)
    return jax.lax.conv_general_dilated(
        xp, w, window_strides=(1, 1), padding="VALID",
        feature_group_count=C,
        dimension_numbers=("NCHW", "OIHW", "NCHW"),
    )


if __name__ == "__main__":
    N, C, H, W = 2, 4, 16, 16
    kernel_size = 3

    key = jax.random.PRNGKey(0)
    x = jax.random.normal(key, (N, C, H, W), dtype=jnp.float32)

    out = gaussian_blur(x, kernel_size)
    out = jax.block_until_ready(out)

    # Reference: depthwise conv with the scipy-style 2-D kernel in every channel.
    k2d = gaussian_kernel_2d(kernel_size)
    weight2d = jnp.asarray(np.broadcast_to(k2d, (C, kernel_size, kernel_size)).copy())
    ref = jax.block_until_ready(gaussian_blur_ref(x, weight2d))

    np.testing.assert_allclose(np.asarray(out), np.asarray(ref), rtol=1e-5, atol=1e-5)
    print("KERNEL_OK")
</pallas_src>

<mosaic_0001>
module attributes {stable_mosaic.version = 11 : i64} {
  func.func @probe(%arg0: memref<8x128xf32, #tpu.memory_space<vmem>>, %arg1: memref<8x128xf32, #tpu.memory_space<vmem>>) attributes {dimension_semantics = [], scalar_prefetch = 0 : i64, scratch_operands = 0 : i64, tpu.core_type = #tpu.core_type<tc>} {
    %c0 = arith.constant 0 : index
    %c0_0 = arith.constant 0 : index
    %0 = vector.load %arg0[%c0, %c0_0] : memref<8x128xf32, #tpu.memory_space<vmem>>, vector<8x128xf32>
    %c1_i32 = arith.constant 1 : i32
    %1 = tpu.dynamic_rotate %0 by %c1_i32 dim 1 : vector<8x128xf32>, i32 -> vector<8x128xf32>
    %c0_1 = arith.constant 0 : index
    %c0_2 = arith.constant 0 : index
    %2 = vector.load %arg1[%c0_1, %c0_2] : memref<8x128xf32, #tpu.memory_space<vmem>>, vector<8x128xf32>
    tpu.vector_store %arg1[%c0_1, %c0_2], %1 {strides = array<i32>} : memref<8x128xf32, #tpu.memory_space<vmem>>, vector<8x128xf32>,
    return
  }
}

</mosaic_0001>

<llo_original>
// kernel: tpu_custom_call.1
$region0: #{tpu_custom_call.1}
  #allocation0 [shape = 'u32[]', space=smem, size = 0x4, offset = 0x4, fixed_abs, tag = 'smem constant byte address 0x4 - core index']
  #allocation1 [shape = 'u32[144,128]{1,0:T(1,128)}', space=vmem, size = 0x12000, scoped, tag = 'internal scratch']
  %s0 = inlined_call_operand.hbm [shape: f32[8,128], index: 0, kind: input, shape index: {}]
  %s1 = inlined_call_operand.hbm [shape: f32[8,128], index: 1, kind: output, shape index: {}]
  %s2 = sld [smem:[#allocation0]]
  $region18: #{tpu_custom_call.1} parent=0
    _
  %s4 = ssub.s32 1, %s2
  %s5 = scalar_select 0, %s4, %s2
  $region1: #{tpu_custom_call.1} parent=0
    #allocation2 [shape = 'u8[4096]{0}', space=vmem, size = 0x1000, scoped, tag = 'input window, operand 0, single buffered']
    #allocation3 [shape = 's32[1]{0}', space=sflag, size = 0x4, scoped, tag = 'scoped memory for tpu_custom_call.1']
    #allocation4 [shape = 's32[1]{0}', space=sflag, size = 0x4, scoped, tag = 'scoped memory for tpu_custom_call.1']
    #allocation5 [shape = 'u8[4096]{0}', space=vmem, size = 0x1000, scoped, tag = 'output window, operand 0, single buffered']
    %6 = vsyncpa [#allocation3], 0
    %7 = vsyncpa [#allocation4], 0
    // Predicated region
    $region2: #{tpu_custom_call.1} parent=1 // pred_check
      _
    $region3: #{tpu_custom_call.1} parent=1 // pred_check_branch
      %9 = sbr.rel (0) target = $region5
    $region4: #{tpu_custom_call.1} parent=1 // pred_region
      %s11 = ssub.s32 128, 128
      %12 = vsyncadd [#allocation3], %s11
      %s14 = sshll.u32 [#allocation2], 4
      %s15 = int_to_ptr.vmem [resolvable:$true] %s14
      %17 = dma.hbm_to_vmem [thread:$0]  %s0, 128, %s15, [#allocation3]
    $region5: #{tpu_custom_call.1} parent=1 // pred_fallthru
      _
    // Predicated region
    $region6: #{tpu_custom_call.1} parent=1 // pred_check
      _
    $region7: #{tpu_custom_call.1} parent=1 // pred_check_branch
      %19 = sbr.rel (0) target = $region9
    $region8: #{tpu_custom_call.1} parent=1 // pred_region
      %20 = dma.done [#allocation3], 128
    $region9: #{tpu_custom_call.1} parent=1 // pred_fallthru
      _
    %v21 = vld [vmem:[#allocation2] sm:$0xff]
    %22 = vrot.lane.b32.xlu0 %v21, 1
    %v23 = vpop.permute.xlu0 %22
    %24 = vst [vmem:[#allocation5] sm:$0xff] %v23
    // Predicated region
    $region10: #{tpu_custom_call.1} parent=1 // pred_check
      _
    $region11: #{tpu_custom_call.1} parent=1 // pred_check_branch
      %26 = sbr.rel (0) target = $region13
    $region12: #{tpu_custom_call.1} parent=1 // pred_region
      %s28 = ssub.s32 128, 128
      %29 = vsyncadd [#allocation4], %s28
      %s31 = sshll.u32 [#allocation5], 4
      %s32 = int_to_ptr.vmem [resolvable:$true] %s31
      %34 = dma.vmem_to_hbm [thread:$0]  %s32, 128, %s1, [#allocation4]
    $region13: #{tpu_custom_call.1} parent=1 // pred_fallthru
      _
    // Predicated region
    $region14: #{tpu_custom_call.1} parent=1 // pred_check
      _
    $region15: #{tpu_custom_call.1} parent=1 // pred_check_branch
      %36 = sbr.rel (0) target = $region17
    $region16: #{tpu_custom_call.1} parent=1 // pred_region
      %37 = dma.done [#allocation4], 128
    $region17: #{tpu_custom_call.1} parent=1 // pred_fallthru
      _
    %38 = vsyncpa [#allocation3], 1
    %39 = vsyncpa [#allocation4], 1

</llo_original>
